<compile_context>
chip_gen: v6e
topology: v6e:2x2x1
jax: 0.10.0
libtpu: 0.0.40
codegen_flags: <defaults>
</compile_context>

<pallas_src>
import jax
import jax.numpy as jnp
from jax.experimental import pallas as pl
from jax.experimental.pallas import tpu as pltpu


def dense_kernel(x_ref, wt_ref, ss_ref, o_ref, acc_ref):
    # x_ref:   (tm, tk)  bf16 tile of the batch
    # wt_ref:  (tk, tn)  bf16 tile of the transposed weight
    # ss_ref:  (2, tn)   f32; row 0 = folded BN scale, row 1 = folded shift
    # o_ref:   (tm, tn)  output tile
    # acc_ref: (tm, tn)  f32 accumulator, resident across the K grid axis
    k = pl.program_id(2)

    @pl.when(k == 0)
    def _():
        acc_ref[...] = jnp.zeros_like(acc_ref)

    acc_ref[...] += jnp.dot(x_ref[...], wt_ref[...],
                            preferred_element_type=jnp.float32)

    @pl.when(k == pl.num_programs(2) - 1)
    def _():
        z = acc_ref[...] * ss_ref[0:1, :] + ss_ref[1:2, :]
        o_ref[...] = jnp.maximum(z, 0.0).astype(o_ref.dtype)


def _pick_feature_tile(dim, target, align=128):
    """Largest multiple-of-`align` divisor of `dim` that is <= target, else full dim."""
    if dim <= target:
        return dim
    t = (target // align) * align
    while t >= align:
        if dim % t == 0:
            return t
        t -= align
    return dim


def dense_forward(x, weight, bias, gamma, beta, running_mean, running_var,
                  eps=1e-5, tm=256, tn=256, tk=256,
                  compute_dtype=jnp.bfloat16):
    """Fused Linear + BatchNorm1d(eval) + ReLU.

    x:      (N, ch_in) float32
    weight: (ch_out, ch_in) float32  (PyTorch Linear layout)
    bias, gamma, beta, running_mean, running_var: (ch_out,)
    """
    n, ch_in = x.shape
    ch_out = weight.shape[0]
    out_dtype = x.dtype

    # ---- glue: fold BN(eval) + linear bias into per-feature scale / shift ----
    scale = gamma / jnp.sqrt(running_var + eps)
    shift = (bias - running_mean) * scale + beta
    ss = jnp.stack([scale, shift]).astype(jnp.float32)        # (2, ch_out)
    wt = weight.T.astype(compute_dtype)                        # (ch_in, ch_out)

    # ---- tiles ----
    # Row tile: multiple of 8; pad the batch up to it so any N works.
    tm_eff = min(tm, ((n + 7) // 8) * 8)
    n_pad = pl.cdiv(n, tm_eff) * tm_eff
    xp = x
    if n_pad != n:
        xp = jnp.pad(x, ((0, n_pad - n), (0, 0)))
    xp = xp.astype(compute_dtype)

    # Feature tiles: multiples of 128 (or the full dim when smaller).
    tn_eff = _pick_feature_tile(ch_out, tn)
    tk_eff = _pick_feature_tile(ch_in, tk)

    grid = (n_pad // tm_eff, ch_out // tn_eff, ch_in // tk_eff)

    out = pl.pallas_call(
        dense_kernel,
        out_shape=jax.ShapeDtypeStruct((n_pad, ch_out), out_dtype),
        grid_spec=pltpu.PrefetchScalarGridSpec(
            num_scalar_prefetch=0,
            grid=grid,
            in_specs=[
                pl.BlockSpec((tm_eff, tk_eff), lambda i, j, k: (i, k)),
                pl.BlockSpec((tk_eff, tn_eff), lambda i, j, k: (k, j)),
                pl.BlockSpec((2, tn_eff), lambda i, j, k: (0, j)),
            ],
            out_specs=pl.BlockSpec((tm_eff, tn_eff), lambda i, j, k: (i, j)),
            scratch_shapes=[pltpu.VMEM((tm_eff, tn_eff), jnp.float32)],
        ),
        compiler_params=pltpu.CompilerParams(
            dimension_semantics=("parallel", "parallel", "arbitrary")),
    )(xp, wt, ss)

    if n_pad != n:
        out = out[:n]
    return out


if __name__ == "__main__":
    # Small shapes consistent with the module (dense(ch_in, ch_out) on (N, ch_in)).
    # N is deliberately not a multiple of the row tile to exercise padding;
    # ch_in=512 gives 2 K-steps, ch_out=384 gives 3 N-steps at tn=128.
    N, CH_IN, CH_OUT = 50, 512, 384

    key = jax.random.PRNGKey(0)
    kx, kw, kb, kg, kbeta, km, kv = jax.random.split(key, 7)

    x = jax.random.normal(kx, (N, CH_IN), dtype=jnp.float32)

    bound = 1.0 / (CH_IN ** 0.5)
    weight = jax.random.uniform(kw, (CH_OUT, CH_IN), minval=-bound, maxval=bound)
    bias = jax.random.uniform(kb, (CH_OUT,), minval=-bound, maxval=bound)
    gamma = jax.random.uniform(kg, (CH_OUT,), minval=0.5, maxval=1.5)
    beta = 0.1 * jax.random.normal(kbeta, (CH_OUT,), dtype=jnp.float32)
    running_mean = 0.1 * jax.random.normal(km, (CH_OUT,), dtype=jnp.float32)
    running_var = jax.random.uniform(kv, (CH_OUT,), minval=0.5, maxval=1.5)

    out = dense_forward(x, weight, bias, gamma, beta, running_mean, running_var)
    out = jax.block_until_ready(out)

    # Silent correctness check against a pure-JAX reference that uses the same
    # bf16 inputs / f32 accumulation as the kernel.
    eps = 1e-5
    xb = x.astype(jnp.bfloat16).astype(jnp.float32)
    wb = weight.astype(jnp.bfloat16).astype(jnp.float32)
    lin = xb @ wb.T + bias
    ref = (lin - running_mean) / jnp.sqrt(running_var + eps) * gamma + beta
    ref = jnp.maximum(ref, 0.0)

    assert out.shape == (N, CH_OUT)
    assert jnp.allclose(out, ref, atol=1e-3, rtol=1e-3)

    print("KERNEL_OK")
</pallas_src>

<mosaic_0001>
module attributes {stable_mosaic.version = 11 : i64} {
  func.func @dense_kernel(%arg0: i32, %arg1: i32, %arg2: i32, %arg3: memref<56x256xbf16, #tpu.memory_space<vmem>>, %arg4: memref<256x128xbf16, #tpu.memory_space<vmem>>, %arg5: memref<2x128xf32, #tpu.memory_space<vmem>>, %arg6: memref<56x128xf32, #tpu.memory_space<vmem>>, %arg7: memref<56x128xf32, #tpu.memory_space<vmem>>) attributes {dimension_semantics = [#tpu.dimension_semantics<parallel>, #tpu.dimension_semantics<parallel>, #tpu.dimension_semantics<arbitrary>], iteration_bounds = array<i64: 1, 3, 2>, scalar_prefetch = 0 : i64, scratch_operands = 1 : i64, tpu.core_type = #tpu.core_type<tc>, window_params = [{transform_indices = @transform_0, window_bounds = array<i64: 56, 256>}, {transform_indices = @transform_1, window_bounds = array<i64: 256, 128>}, {transform_indices = @transform_2, window_bounds = array<i64: 2, 128>}, {transform_indices = @transform_3, window_bounds = array<i64: 56, 128>}]} {
    %c0_i32 = arith.constant 0 : i32
    %0 = arith.cmpi eq, %arg2, %c0_i32 : i32
    %1 = arith.extui %0 : i1 to i32
    %c0_i32_0 = arith.constant 0 : i32
    %2 = arith.cmpi ne, %1, %c0_i32_0 : i32
    scf.if %2 {
      %cst_9 = arith.constant 0.000000e+00 : f32
      %12 = vector.broadcast %cst_9 : f32 to vector<56x128xf32>
      %c0_10 = arith.constant 0 : index
      %c0_11 = arith.constant 0 : index
      %13 = vector.load %arg7[%c0_10, %c0_11] : memref<56x128xf32, #tpu.memory_space<vmem>>, vector<56x128xf32>
      tpu.vector_store %arg7[%c0_10, %c0_11], %12 {strides = array<i32>} : memref<56x128xf32, #tpu.memory_space<vmem>>, vector<56x128xf32>,
    } else {
    }
    %c0 = arith.constant 0 : index
    %c0_1 = arith.constant 0 : index
    %3 = vector.load %arg7[%c0, %c0_1] : memref<56x128xf32, #tpu.memory_space<vmem>>, vector<56x128xf32>
    %c0_2 = arith.constant 0 : index
    %c0_3 = arith.constant 0 : index
    %4 = vector.load %arg3[%c0_2, %c0_3] : memref<56x256xbf16, #tpu.memory_space<vmem>>, vector<56x256xbf16>
    %c0_4 = arith.constant 0 : index
    %c0_5 = arith.constant 0 : index
    %5 = vector.load %arg4[%c0_4, %c0_5] : memref<256x128xbf16, #tpu.memory_space<vmem>>, vector<256x128xbf16>
    %cst = arith.constant dense<0.000000e+00> : vector<56x128xf32>
    %6 = tpu.matmul %4, %5, %cst {dimension_numbers = #tpu.dot_dimension_numbers<[1], [0], [0], [1], [0, 0, 1, 1], [], []>} : vector<56x256xbf16>, vector<256x128xbf16>, vector<56x128xf32> -> vector<56x128xf32>
    %7 = arith.addf %3, %6 : vector<56x128xf32>
    %c0_6 = arith.constant 0 : index
    %c0_7 = arith.constant 0 : index
    %8 = vector.load %arg7[%c0_6, %c0_7] : memref<56x128xf32, #tpu.memory_space<vmem>>, vector<56x128xf32>
    tpu.vector_store %arg7[%c0_6, %c0_7], %7 {strides = array<i32>} : memref<56x128xf32, #tpu.memory_space<vmem>>, vector<56x128xf32>,
    %c1_i32 = arith.constant 1 : i32
    %9 = arith.cmpi eq, %arg2, %c1_i32 : i32
    %10 = arith.extui %9 : i1 to i32
    %c0_i32_8 = arith.constant 0 : i32
    %11 = arith.cmpi ne, %10, %c0_i32_8 : i32
    scf.if %11 {
      %c0_9 = arith.constant 0 : index
      %c0_10 = arith.constant 0 : index
      %12 = vector.load %arg7[%c0_9, %c0_10] : memref<56x128xf32, #tpu.memory_space<vmem>>, vector<56x128xf32>
      %c0_11 = arith.constant 0 : index
      %c0_12 = arith.constant 0 : index
      %13 = vector.load %arg5[%c0_11, %c0_12] : memref<2x128xf32, #tpu.memory_space<vmem>>, vector<1x128xf32>
      %14 = vector.broadcast %13 : vector<1x128xf32> to vector<56x128xf32>
      %15 = arith.mulf %12, %14 : vector<56x128xf32>
      %c1 = arith.constant 1 : index
      %c0_13 = arith.constant 0 : index
      %16 = vector.load %arg5[%c1, %c0_13] : memref<2x128xf32, #tpu.memory_space<vmem>>, vector<1x128xf32>
      %17 = vector.broadcast %16 : vector<1x128xf32> to vector<56x128xf32>
      %18 = arith.addf %15, %17 : vector<56x128xf32>
      %cst_14 = arith.constant 0.000000e+00 : f32
      %19 = vector.broadcast %cst_14 : f32 to vector<56x128xf32>
      %20 = arith.maximumf %18, %19 : vector<56x128xf32>
      %c0_15 = arith.constant 0 : index
      %c0_16 = arith.constant 0 : index
      %21 = vector.load %arg6[%c0_15, %c0_16] : memref<56x128xf32, #tpu.memory_space<vmem>>, vector<56x128xf32>
      tpu.vector_store %arg6[%c0_15, %c0_16], %20 {strides = array<i32>} : memref<56x128xf32, #tpu.memory_space<vmem>>, vector<56x128xf32>,
    } else {
    }
    return
  }
  func.func @transform_0(%arg0: i32, %arg1: i32, %arg2: i32) -> (i32, i32) {
    %c0_i32 = arith.constant 0 : i32
    return %arg0, %arg2 : i32, i32
  }
  func.func @transform_1(%arg0: i32, %arg1: i32, %arg2: i32) -> (i32, i32) {
    %c0_i32 = arith.constant 0 : i32
    return %arg2, %arg1 : i32, i32
  }
  func.func @transform_2(%arg0: i32, %arg1: i32, %arg2: i32) -> (i32, i32) {
    %c0_i32 = arith.constant 0 : i32
    %c0_i32_0 = arith.constant 0 : i32
    return %c0_i32, %arg1 : i32, i32
  }
  func.func @transform_3(%arg0: i32, %arg1: i32, %arg2: i32) -> (i32, i32) {
    %c0_i32 = arith.constant 0 : i32
    return %arg0, %arg1 : i32, i32
  }
}

</mosaic_0001>

<llo_original>
// kernel: tpu_custom_call.1
$region0: #{tpu_custom_call.1}
  #allocation0 [shape = 'u32[]', space=smem, size = 0x4, offset = 0x4, fixed_abs, tag = 'smem constant byte address 0x4 - core index']
  #allocation1 [shape = 'u32[144,128]{1,0:T(1,128)}', space=vmem, size = 0x12000, scoped, tag = 'internal scratch']
  #allocation2 [shape = 'f32[56,128]{1,0:T(8,128)}', space=vmem, size = 0x7000, scoped, tag = 'scratch operand']
  %s0 = inlined_call_operand.hbm [shape: bf16[56,512], index: 0, kind: input, shape index: {}]
  %s1 = inlined_call_operand.hbm [shape: bf16[512,384], index: 1, kind: input, shape index: {}]
  %s2 = inlined_call_operand.hbm [shape: f32[2,384], index: 2, kind: input, shape index: {}]
  %s3 = inlined_call_operand.hbm [shape: f32[56,384], index: 3, kind: output, shape index: {}]
  %s4 = sld [smem:[#allocation0]]
  $region65: #{tpu_custom_call.1} parent=0
    _
  %s6 = ssub.s32 1, %s4
  %s7 = scalar_select 0, %s6, %s4
  $region1: #{tpu_custom_call.1} parent=0
    #allocation3 [shape = 'u8[57344]{0}', space=vmem, size = 0xe000, scoped, tag = 'input window, operand 0']
    #allocation4 [shape = 's32[2]{0}', space=sflag, size = 0x8, scoped, tag = 'scoped memory for tpu_custom_call.1']
    #allocation5 [shape = 's32[2]{0}', space=sflag, size = 0x8, scoped, tag = 'scoped memory for tpu_custom_call.1']
    #allocation6 [shape = 'u8[131072]{0}', space=vmem, size = 0x20000, scoped, tag = 'input window, operand 1']
    #allocation7 [shape = 's32[2]{0}', space=sflag, size = 0x8, scoped, tag = 'scoped memory for tpu_custom_call.1']
    #allocation8 [shape = 'u8[2048]{0}', space=vmem, size = 0x800, scoped, tag = 'input window, operand 2']
    #allocation9 [shape = 'u8[57344]{0}', space=vmem, size = 0xe000, scoped, tag = 'output window, operand 0']
    %8 = vsyncpa [#allocation4], 0
    %s9 = scalar_lea.sflag [#allocation4], 1
    %10 = vsyncpa %s9, 0
    %11 = vsyncpa [#allocation7], 0
    %s12 = scalar_lea.sflag [#allocation7], 1
    %13 = vsyncpa %s12, 0
    %14 = vsyncpa [#allocation5], 0
    %s15 = scalar_lea.sflag [#allocation5], 1
    %16 = vsyncpa %s15, 0
    loop: start=0, step=1, limit=8
    $region2: #{tpu_custom_call.1} parent=1 // loop_pre_header
      _
    $region3: #{tpu_custom_call.1} parent=1 // loop_header
      %s18 = sphi 0, %s22
      %p19 = scmp.ge.s32.totalorder %s18, 8
      %s25 = sphi 0, %s44
      %s26 = sphi 0, %s40
      %s27 = sphi 0, %s36
      %s28 = sphi 0, %s25
      %s29 = sphi 0, %s26
      %s30 = sphi 0, %s27
      %s31 = sphi 0, %s28
      %s32 = sphi 0, %s29
      %s33 = sphi 0, %s30
      %s49 = sphi 0, %s51
      %s52 = sphi 0, %s49
      %s53 = sphi 0, %s52
      %s69 = sphi 0, %s53
      %s77 = sphi 0, %s79
      %s80 = sphi 0, %s77
      %s81 = sphi 0, %s80
      %s97 = sphi 0, %s81
      %s103 = sphi 0, %s105
      %s106 = sphi 0, %s103
      %s107 = sphi 0, %s106
      %s123 = sphi 0, %s107
      %s131 = sphi 0, %s133
      %s134 = sphi 0, %s131
      %s135 = sphi 0, %s134
      %s151 = sphi 0, %s135
    $region4: #{tpu_custom_call.1} parent=1 // loop_header_branch
      %21 = sbr.rel (%p19) target = $region8
    $region5: #{tpu_custom_call.1} parent=1 // loop_body
      %s23 = ssub.s32 %s18, 1
      %s24 = ssub.s32 %s18, 2
      %s34 = sadd.s32 1, %s27
      %p35 = scmp.ge.s32.totalorder %s34, 2
      %s36 = scalar_select %p35, 0, %s34
      %s37 = sadd.s32 1, %s26
      %s38 = scalar_select %p35, %s37, %s26
      %p39 = scmp.ge.s32.totalorder %s38, 3
      %s40 = scalar_select %p39, 0, %s38
      %s41 = sadd.s32 1, %s25
      %s42 = scalar_select %p39, %s41, %s25
      %p43 = scmp.ge.s32.totalorder %s42, 1
      %s44 = scalar_select %p43, 0, %s42
      %s45 = ssub.s32 %s25, %s44
      %s46 = ssub.s32 %s27, %s36
      %s47 = sor.u32 %s45, %s46
      %p48 = scmp.eq.s32.totalorder %s47, 0
      %s50 = sadd.s32 %s49, 1
      %s51 = scalar_select %p48, %s49, %s50
      %p54 = pneg %p48
      %p55 = scmp.eq.s32.totalorder %s18, 5
      %p56 = por %p54, %p55
      %p57 = scmp.ne.s32.totalorder %s49, %s52
      %p58 = scmp.eq.s32.totalorder %s18, 0
      %p59 = por %p57, %p58
      %p60 = scmp.ne.s32.totalorder %s49, %s52
      %p61 = scmp.eq.s32.totalorder %s23, 5
      %p62 = por %p60, %p61
      %p63 = scmp.ne.s32.totalorder %s52, %s53
      %p64 = scmp.eq.s32.totalorder %s23, 0
      %p65 = por %p63, %p64
      %p66 = scmp.ne.s32.totalorder %s52, %s53
      %p67 = scmp.eq.s32.totalorder %s24, 5
      %p68 = por %p66, %p67
      %p70 = scmp.ne.s32.totalorder %s53, %s69
      %p71 = scmp.eq.s32.totalorder %s24, 0
      %p72 = por %p70, %p71
      %s73 = ssub.s32 %s27, %s36
      %s74 = ssub.s32 %s26, %s40
      %s75 = sor.u32 %s73, %s74
      %p76 = scmp.eq.s32.totalorder %s75, 0
      %s78 = sadd.s32 %s77, 1
      %s79 = scalar_select %p76, %s77, %s78
      %p82 = pneg %p76
      %p83 = scmp.eq.s32.totalorder %s18, 5
      %p84 = por %p82, %p83
      %p85 = scmp.ne.s32.totalorder %s77, %s80
      %p86 = scmp.eq.s32.totalorder %s18, 0
      %p87 = por %p85, %p86
      %p88 = scmp.ne.s32.totalorder %s77, %s80
      %p89 = scmp.eq.s32.totalorder %s23, 5
      %p90 = por %p88, %p89
      %p91 = scmp.ne.s32.totalorder %s80, %s81
      %p92 = scmp.eq.s32.totalorder %s23, 0
      %p93 = por %p91, %p92
      %p94 = scmp.ne.s32.totalorder %s80, %s81
      %p95 = scmp.eq.s32.totalorder %s24, 5
      %p96 = por %p94, %p95
      %p98 = scmp.ne.s32.totalorder %s81, %s97
      %p99 = scmp.eq.s32.totalorder %s24, 0
      %p100 = por %p98, %p99
      %s101 = ssub.s32 %s26, %s40
      %p102 = scmp.eq.s32.totalorder %s101, 0
      %s104 = sadd.s32 %s103, 1
      %s105 = scalar_select %p102, %s103, %s104
      %p108 = pneg %p102
      %p109 = scmp.eq.s32.totalorder %s18, 5
      %p110 = por %p108, %p109
      %p111 = scmp.ne.s32.totalorder %s103, %s106
      %p112 = scmp.eq.s32.totalorder %s18, 0
      %p113 = por %p111, %p112
      %p114 = scmp.ne.s32.totalorder %s103, %s106
      %p115 = scmp.eq.s32.totalorder %s23, 5
      %p116 = por %p114, %p115
      %p117 = scmp.ne.s32.totalorder %s106, %s107
      %p118 = scmp.eq.s32.totalorder %s23, 0
      %p119 = por %p117, %p118
      %p120 = scmp.ne.s32.totalorder %s106, %s107
      %p121 = scmp.eq.s32.totalorder %s24, 5
      %p122 = por %p120, %p121
      %p124 = scmp.ne.s32.totalorder %s107, %s123
      %p125 = scmp.eq.s32.totalorder %s24, 0
      %p126 = por %p124, %p125
      %s127 = ssub.s32 %s25, %s44
      %s128 = ssub.s32 %s26, %s40
      %s129 = sor.u32 %s127, %s128
      %p130 = scmp.eq.s32.totalorder %s129, 0
      %s132 = sadd.s32 %s131, 1
      %s133 = scalar_select %p130, %s131, %s132
      %p136 = pneg %p130
      %p137 = scmp.eq.s32.totalorder %s18, 5
      %p138 = por %p136, %p137
      %p139 = scmp.ne.s32.totalorder %s131, %s134
      %p140 = scmp.eq.s32.totalorder %s18, 0
      %p141 = por %p139, %p140
      %p142 = scmp.ne.s32.totalorder %s131, %s134
      %p143 = scmp.eq.s32.totalorder %s23, 5
      %p144 = por %p142, %p143
      %p145 = scmp.ne.s32.totalorder %s134, %s135
      %p146 = scmp.eq.s32.totalorder %s23, 0
      %p147 = por %p145, %p146
      %p148 = scmp.ne.s32.totalorder %s134, %s135
      %p149 = scmp.eq.s32.totalorder %s24, 5
      %p150 = por %p148, %p149
      %p152 = scmp.ne.s32.totalorder %s135, %s151
      %p153 = scmp.eq.s32.totalorder %s24, 0
      %p154 = por %p152, %p153
      %p155 = scmp.le.s32.totalorder 1, %s18
      %p156 = scmp.lt.s32.totalorder %s18, 7
      %p157 = pnand %p155, %p156
      %p158 = pneg %p157
      // Predicated region
      $region9: #{tpu_custom_call.1} parent=5 // pred_check
        _
      $region10: #{tpu_custom_call.1} parent=5 // pred_check_branch
        %160 = sbr.rel (%p157) target = $region12
      $region11: #{tpu_custom_call.1} parent=5 // pred_region
        %s161 = ssub.s32 %s18, 1
      $region12: #{tpu_custom_call.1} parent=5 // pred_fallthru
        _
      %p162 = scmp.lt.s32.totalorder %s18, 6
      // Predicated region
      $region13: #{tpu_custom_call.1} parent=5 // pred_check
        %p163 = pneg %p162
      $region14: #{tpu_custom_call.1} parent=5 // pred_check_branch
        %165 = sbr.rel (%p163) target = $region16
      $region15: #{tpu_custom_call.1} parent=5 // pred_region
        // Predicated region
        $region17: #{tpu_custom_call.1} parent=15 // pred_check
          %p166 = pneg %p59
        $region18: #{tpu_custom_call.1} parent=15 // pred_check_branch
          %168 = sbr.rel (%p166) target = $region20
        $region19: #{tpu_custom_call.1} parent=15 // pred_region
          %s169 = sand.u32 %s49, 1
          %s170 = scalar_lea.sflag [#allocation4], %s169
          %s171 = sand.u32 %s49, 1
          %s172 = smul.addr %s171, 56
          %s173 = scalar_lea.vmem [#allocation3], %s172
          %s174 = smul.u32 7, %s25
          %s175 = smul.u32 2, %s27
          %s177 = ssub.s32 896, 896
          %178 = vsyncadd %s170, %s177
          %s179 = smul.addr %s174, 4
          %s180 = sadd.s32 %s175, %s179
          %s181 = smul.addr %s180, 64
          %s182 = scalar_lea.hbm %s0, %s181
          %s183 = sshll.u32 %s173, 4
          %s184 = int_to_ptr.vmem [resolvable:$true] %s183
          %189 = dma.hbm_to_vmem [thread:$0]  %s182, 896, %s184, %s170, 256, 128, 8
        $region20: #{tpu_custom_call.1} parent=15 // pred_fallthru
          _
        // Predicated region
        $region21: #{tpu_custom_call.1} parent=15 // pred_check
          %p190 = pneg %p87
        $region22: #{tpu_custom_call.1} parent=15 // pred_check_branch
          %192 = sbr.rel (%p190) target = $region24
        $region23: #{tpu_custom_call.1} parent=15 // pred_region
          %s193 = sand.u32 %s18, 1
          %s194 = scalar_lea.sflag [#allocation7], %s193
          %s195 = sand.u32 %s77, 1
          %s196 = smul.addr %s195, 128
          %s197 = scalar_lea.vmem [#allocation6], %s196
          %s198 = smul.u32 32, %s27
          %s200 = ssub.s32 2048, 2048
          %201 = vsyncadd %s194, %s200
          %s202 = smul.addr %s198, 3
          %s203 = sadd.s32 %s26, %s202
          %s204 = smul.addr %s203, 64
          %s205 = scalar_lea.hbm %s1, %s204
          %s206 = sshll.u32 %s197, 4
          %s207 = int_to_ptr.vmem [resolvable:$true] %s206
          %212 = dma.hbm_to_vmem [thread:$0]  %s205, 2048, %s207, %s194, 192, 64, 4
        $region24: #{tpu_custom_call.1} parent=15 // pred_fallthru
          _
        // Predicated region
        $region25: #{tpu_custom_call.1} parent=15 // pred_check
          %p213 = pneg %p113
        $region26: #{tpu_custom_call.1} parent=15 // pred_check_branch
          %215 = sbr.rel (%p213) target = $region28
        $region27: #{tpu_custom_call.1} parent=15 // pred_region
          %s216 = sand.u32 %s18, 1
          %s217 = scalar_lea.sflag [#allocation7], %s216
          %s218 = sand.u32 %s103, 1
          %s219 = smul.addr %s218, 2
          %s220 = scalar_lea.vmem [#allocation8], %s219
          %s222 = ssub.s32 32, 32
          %223 = vsyncadd %s217, %s222
          %s224 = smul.addr %s26, 32
          %s225 = scalar_lea.hbm %s2, %s224
          %s227 = sshll.u32 %s220, 4
          %s228 = int_to_ptr.vmem [resolvable:$true] %s227
          %230 = dma.hbm_to_vmem [thread:$0]  %s225, 32, %s228, %s217
        $region28: #{tpu_custom_call.1} parent=15 // pred_fallthru
          _
      $region16: #{tpu_custom_call.1} parent=5 // pred_fallthru
        _
      %p231 = scmp.le.s32.totalorder 1, %s18
      %p232 = scmp.lt.s32.totalorder %s18, 7
      %p233 = pnand %p231, %p232
      %p234 = pneg %p233
      // Predicated region
      $region29: #{tpu_custom_call.1} parent=5 // pred_check
        _
      $region30: #{tpu_custom_call.1} parent=5 // pred_check_branch
        %236 = sbr.rel (%p233) target = $region32
      $region31: #{tpu_custom_call.1} parent=5 // pred_region
        %s237 = ssub.s32 %s18, 1
        %s238 = sand.u32 %s52, 1
        %s239 = scalar_lea.sflag [#allocation4], %s238
        %s240 = sand.u32 %s52, 1
        %s241 = smul.addr %s240, 56
        %s242 = scalar_lea.vmem [#allocation3], %s241
        // Predicated region
        $region33: #{tpu_custom_call.1} parent=31 // pred_check
          %p243 = pneg %p65
        $region34: #{tpu_custom_call.1} parent=31 // pred_check_branch
          %245 = sbr.rel (%p243) target = $region36
        $region35: #{tpu_custom_call.1} parent=31 // pred_region
          %246 = dma.done %s239, 896
        $region36: #{tpu_custom_call.1} parent=31 // pred_fallthru
          _
        %s247 = sand.u32 %s23, 1
        %s248 = scalar_lea.sflag [#allocation7], %s247
        %s249 = sand.u32 %s80, 1
        %s250 = smul.addr %s249, 128
        %s251 = scalar_lea.vmem [#allocation6], %s250
        // Predicated region
        $region37: #{tpu_custom_call.1} parent=31 // pred_check
          %p252 = pneg %p93
        $region38: #{tpu_custom_call.1} parent=31 // pred_check_branch
          %254 = sbr.rel (%p252) target = $region40
        $region39: #{tpu_custom_call.1} parent=31 // pred_region
          %255 = dma.done %s248, 2048
        $region40: #{tpu_custom_call.1} parent=31 // pred_fallthru
          _
        %s256 = sand.u32 %s23, 1
        %s257 = scalar_lea.sflag [#allocation7], %s256
        %s258 = sand.u32 %s106, 1
        %s259 = smul.addr %s258, 2
        %s260 = scalar_lea.vmem [#allocation8], %s259
        // Predicated region
        $region41: #{tpu_custom_call.1} parent=31 // pred_check
          %p261 = pneg %p119
        $region42: #{tpu_custom_call.1} parent=31 // pred_check_branch
          %263 = sbr.rel (%p261) target = $region44
        $region43: #{tpu_custom_call.1} parent=31 // pred_region
          %264 = dma.done %s257, 32
        $region44: #{tpu_custom_call.1} parent=31 // pred_fallthru
          _
        %s265 = sand.u32 %s52, 1
        %s266 = scalar_lea.sflag [#allocation4], %s265
        %s267 = sand.u32 %s52, 1
        %s268 = smul.addr %s267, 56
        %s269 = scalar_lea.vmem [#allocation3], %s268
        %p270 = pneg %p65
        %p271 = pneg %p62
        %s272 = sand.u32 %s23, 1
        %s273 = scalar_lea.sflag [#allocation7], %s272
        %s274 = sand.u32 %s80, 1
        %s275 = smul.addr %s274, 128
        %s276 = scalar_lea.vmem [#allocation6], %s275
        %p277 = pneg %p93
        %p278 = pneg %p90
        %s279 = sand.u32 %s23, 1
        %s280 = scalar_lea.sflag [#allocation7], %s279
        %s281 = sand.u32 %s106, 1
        %s282 = smul.addr %s281, 2
        %s283 = scalar_lea.vmem [#allocation8], %s282
        %p284 = pneg %p119
        %p285 = pneg %p116
        %p286 = pneg %p147
        %p287 = pneg %p144
        %s288 = sand.u32 %s134, 1
        %s289 = scalar_lea.sflag [#allocation5], %s288
        %s290 = sand.u32 %s134, 1
        %s291 = smul.addr %s290, 56
        %s292 = scalar_lea.vmem [#allocation9], %s291
        %s293 = smul.u32 7, %s28
        %s294 = smul.u32 2, %s30
        %s295 = smul.u32 32, %s30
        %s296 = smul.u32 7, %s28
        %p298 = scmp.eq.s32.totalorder %s30, 0
        // Predicated region
        $region45: #{tpu_custom_call.1} parent=31 // pred_check
          %p299 = pneg %p298
        $region46: #{tpu_custom_call.1} parent=31 // pred_check_branch
          %301 = sbr.rel (%p299) target = $region48
        $region47: #{tpu_custom_call.1} parent=31 // pred_region
          %302 = vst [vmem:[#allocation2] sm:$0xff] 0.0
          %303 = vst [vmem:[#allocation2 + $0x8] sm:$0xff] 0.0
          %304 = vst [vmem:[#allocation2 + $0x10] sm:$0xff] 0.0
          %305 = vst [vmem:[#allocation2 + $0x18] sm:$0xff] 0.0
          %306 = vst [vmem:[#allocation2 + $0x20] sm:$0xff] 0.0
          %307 = vst [vmem:[#allocation2 + $0x28] sm:$0xff] 0.0
          %308 = vst [vmem:[#allocation2 + $0x30] sm:$0xff] 0.0
        $region48: #{tpu_custom_call.1} parent=31 // pred_fallthru
          _
        %v309 = vld [vmem:[#allocation2] sm:$0xff]
        %v310 = vld [vmem:[#allocation2 + $0x8] sm:$0xff]
        %v311 = vld [vmem:[#allocation2 + $0x10] sm:$0xff]
        %v312 = vld [vmem:[#allocation2 + $0x18] sm:$0xff]
        %v313 = vld [vmem:[#allocation2 + $0x20] sm:$0xff]
        %v314 = vld [vmem:[#allocation2 + $0x28] sm:$0xff]
        %v315 = vld [vmem:[#allocation2 + $0x30] sm:$0xff]
        %v316 = vld [vmem:[%s242] sm:$0xff]
        %v317 = vld [vmem:[%s242 + $0x8] sm:$0xff]
        %v318 = vld [vmem:[%s242 + $0x10] sm:$0xff]
        %v319 = vld [vmem:[%s242 + $0x18] sm:$0xff]
        %v320 = vld [vmem:[%s242 + $0x20] sm:$0xff]
        %v321 = vld [vmem:[%s242 + $0x28] sm:$0xff]
        %v322 = vld [vmem:[%s242 + $0x30] sm:$0xff]
        %v323 = vld [vmem:[%s251] sm:$0xf]
        %v324 = vld [vmem:[%s251 + $0x4] sm:$0xf]
        %v325 = vld [vmem:[%s251 + $0x8] sm:$0xf]
        %v326 = vld [vmem:[%s251 + $0xc] sm:$0xf]
        %v327 = vld [vmem:[%s251 + $0x10] sm:$0xf]
        %v328 = vld [vmem:[%s251 + $0x14] sm:$0xf]
        %v329 = vld [vmem:[%s251 + $0x18] sm:$0xf]
        %v330 = vld [vmem:[%s251 + $0x1c] sm:$0xf]
        %v331 = vld [vmem:[%s251 + $0x20] sm:$0xf]
        %v332 = vld [vmem:[%s251 + $0x24] sm:$0xf]
        %v333 = vld [vmem:[%s251 + $0x28] sm:$0xf]
        %v334 = vld [vmem:[%s251 + $0x2c] sm:$0xf]
        %v335 = vld [vmem:[%s251 + $0x30] sm:$0xf]
        %v336 = vld [vmem:[%s251 + $0x34] sm:$0xf]
        %v337 = vld [vmem:[%s251 + $0x38] sm:$0xf]
        %v338 = vld [vmem:[%s251 + $0x3c] sm:$0xf]
        %v339 = vld [vmem:[%s251 + $0x40] sm:$0xf]
        %v340 = vld [vmem:[%s251 + $0x44] sm:$0xf]
        %v341 = vld [vmem:[%s251 + $0x48] sm:$0xf]
        %v342 = vld [vmem:[%s251 + $0x4c] sm:$0xf]
        %v343 = vld [vmem:[%s251 + $0x50] sm:$0xf]
        %v344 = vld [vmem:[%s251 + $0x54] sm:$0xf]
        %v345 = vld [vmem:[%s251 + $0x58] sm:$0xf]
        %v346 = vld [vmem:[%s251 + $0x5c] sm:$0xf]
        %v347 = vld [vmem:[%s251 + $0x60] sm:$0xf]
        %v348 = vld [vmem:[%s251 + $0x64] sm:$0xf]
        %v349 = vld [vmem:[%s251 + $0x68] sm:$0xf]
        %v350 = vld [vmem:[%s251 + $0x6c] sm:$0xf]
        %v351 = vld [vmem:[%s251 + $0x70] sm:$0xf]
        %v352 = vld [vmem:[%s251 + $0x74] sm:$0xf]
        %v353 = vld [vmem:[%s251 + $0x78] sm:$0xf]
        %v354 = vld [vmem:[%s251 + $0x7c] sm:$0xf]
        %v362 = vunpack.c.l.b16 %v316
        %v363 = vunpack.c.h.b16 %v316
        %v364 = vunpack.c.l.b16 %v317
        %v365 = vunpack.c.h.b16 %v317
        %v366 = vunpack.c.l.b16 %v318
        %v367 = vunpack.c.h.b16 %v318
        %v368 = vunpack.c.l.b16 %v319
        %v369 = vunpack.c.h.b16 %v319
        %v370 = vunpack.c.l.b16 %v320
        %v371 = vunpack.c.h.b16 %v320
        %v372 = vunpack.c.l.b16 %v321
        %v373 = vunpack.c.h.b16 %v321
        %v374 = vunpack.c.l.b16 %v322
        %v375 = vunpack.c.h.b16 %v322
        %v376 = vpack.c.b16 %v364, %v362
        %v377 = vpack.c.b16 %v365, %v363
        %v378 = vpack.c.b16 %v368, %v366
        %v379 = vpack.c.b16 %v369, %v367
        %v380 = vpack.c.b16 %v372, %v370
        %v381 = vpack.c.b16 %v373, %v371
        %v382 = vpack.c.b16 %v374, %v374
        %v383 = vpack.c.b16 %v375, %v375
        %v424 = vunpack.c.l.b16 %v323
        %v425 = vunpack.c.l.b16 %v324
        %v426 = vunpack.c.l.b16 %v325
        %v427 = vunpack.c.l.b16 %v326
        %v428 = vunpack.c.l.b16 %v327
        %v429 = vunpack.c.l.b16 %v328
        %v430 = vunpack.c.l.b16 %v329
        %v431 = vunpack.c.l.b16 %v330
        %v432 = vunpack.c.l.b16 %v331
        %v433 = vunpack.c.l.b16 %v332
        %v434 = vunpack.c.l.b16 %v333
        %v435 = vunpack.c.l.b16 %v334
        %v436 = vunpack.c.l.b16 %v335
        %v437 = vunpack.c.l.b16 %v336
        %v438 = vunpack.c.l.b16 %v337
        %v439 = vunpack.c.l.b16 %v338
        %v440 = vunpack.c.l.b16 %v339
        %v441 = vunpack.c.l.b16 %v340
        %v442 = vunpack.c.l.b16 %v341
        %v443 = vunpack.c.l.b16 %v342
        %v444 = vunpack.c.l.b16 %v343
        %v445 = vunpack.c.l.b16 %v344
        %v446 = vunpack.c.l.b16 %v345
        %v447 = vunpack.c.l.b16 %v346
        %v448 = vunpack.c.l.b16 %v347
        %v449 = vunpack.c.l.b16 %v348
        %v450 = vunpack.c.l.b16 %v349
        %v451 = vunpack.c.l.b16 %v350
        %v452 = vunpack.c.l.b16 %v351
        %v453 = vunpack.c.l.b16 %v352
        %v454 = vunpack.c.l.b16 %v353
        %v455 = vunpack.c.l.b16 %v354
        %v456 = vpack.c.b16 %v425, %v424
        %v457 = vpack.c.b16 %v427, %v426
        %v458 = vpack.c.b16 %v429, %v428
        %v459 = vpack.c.b16 %v431, %v430
        %v460 = vpack.c.b16 %v433, %v432
        %v461 = vpack.c.b16 %v435, %v434
        %v462 = vpack.c.b16 %v437, %v436
        %v463 = vpack.c.b16 %v439, %v438
        %v464 = vpack.c.b16 %v441, %v440
        %v465 = vpack.c.b16 %v443, %v442
        %v466 = vpack.c.b16 %v445, %v444
        %v467 = vpack.c.b16 %v447, %v446
        %v468 = vpack.c.b16 %v449, %v448
        %v469 = vpack.c.b16 %v451, %v450
        %v470 = vpack.c.b16 %v453, %v452
        %v471 = vpack.c.b16 %v455, %v454
        %488 = vmatprep.subr.bf16.mxu0 0
        %489 = vmatpush1.bf16.msra.mxu0 %v463
        %490 = vmatprep.subr.bf16.mxu0 0
        %491 = vmatpush1.bf16.msra.mxu0 %v462
        %492 = vmatprep.subr.bf16.mxu0 0
        %493 = vmatpush1.bf16.msra.mxu0 %v461
        %494 = vmatprep.subr.bf16.mxu0 0
        %495 = vmatpush1.bf16.msra.mxu0 %v460
        %496 = vmatprep.subr.bf16.mxu0 0
        %497 = vmatpush1.bf16.msra.mxu0 %v459
        %498 = vmatprep.subr.bf16.mxu0 0
        %499 = vmatpush1.bf16.msra.mxu0 %v458
        %500 = vmatprep.subr.bf16.mxu0 0
        %501 = vmatpush1.bf16.msra.mxu0 %v457
        %502 = vmatprep.subr.bf16.mxu0 0
        %503 = vmatpush1.bf16.msra.mxu0 %v456
        %504 = vmatprep.subr.bf16.mxu0 0
        %505 = vmatpush2.bf16.msra.mxu0 %v471
        %506 = vmatprep.subr.bf16.mxu0 0
        %507 = vmatpush2.bf16.msra.mxu0 %v470
        %508 = vmatprep.subr.bf16.mxu0 0
        %509 = vmatpush2.bf16.msra.mxu0 %v469
        %510 = vmatprep.subr.bf16.mxu0 0
        %511 = vmatpush2.bf16.msra.mxu0 %v468
        %512 = vmatprep.subr.bf16.mxu0 0
        %513 = vmatpush2.bf16.msra.mxu0 %v467
        %514 = vmatprep.subr.bf16.mxu0 0
        %515 = vmatpush2.bf16.msra.mxu0 %v466
        %516 = vmatprep.subr.bf16.mxu0 0
        %517 = vmatpush2.bf16.msra.mxu0 %v465
        %518 = vmatprep.subr.bf16.mxu0 0
        %519 = vmatpush2.bf16.msra.mxu0 %v464
        %520 = vmatprep.mubr.bf16.mxu0 %v377
        %521 = vmatmul.mubr.bf16.gmra.mxu0 %v376
        %v522 = vpop.f32.mrf.mxu0
        %v523 = vadd.f32 0.0, %v522
        %v524 = vpop.f32.mrf.mxu0
        %v525 = vpop.f32.mrf.mxu0
        %v526 = vadd.f32 0.0, %v525
        %v527 = vpop.f32.mrf.mxu0
        %528 = vmatprep.mubr.bf16.mxu0 %v379
        %529 = vmatmul.mubr.bf16.gmra.mxu0 %v378
        %v530 = vpop.f32.mrf.mxu0
        %v531 = vadd.f32 0.0, %v530
        %v532 = vpop.f32.mrf.mxu0
        %v533 = vpop.f32.mrf.mxu0
        %v534 = vadd.f32 0.0, %v533
        %v535 = vpop.f32.mrf.mxu0
        %536 = vmatprep.mubr.bf16.mxu0 %v381
        %537 = vmatmul.mubr.bf16.gmra.mxu0 %v380
        %v538 = vpop.f32.mrf.mxu0
        %v539 = vadd.f32 0.0, %v538
        %v540 = vpop.f32.mrf.mxu0
        %v541 = vpop.f32.mrf.mxu0
        %v542 = vadd.f32 0.0, %v541
        %v543 = vpop.f32.mrf.mxu0
        %544 = vmatprep.mubr.bf16.mxu0 %v383
        %545 = vmatmul.mubr.bf16.gmra.mxu0 %v382
        %v546 = vpop.f32.mrf.mxu0
        %v547 = vadd.f32 0.0, %v546
        %v548 = vpop.f32.mrf.mxu0
        %v549 = vpop.f32.mrf.mxu0
        %v550 = vpop.f32.mrf.mxu0
        %551 = vdwg.mxu0
        %v552 = vadd.f32 %v309, %v523
        %v553 = vadd.f32 %v310, %v526
        %v554 = vadd.f32 %v311, %v531
        %v555 = vadd.f32 %v312, %v534
        %v556 = vadd.f32 %v313, %v539
        %v557 = vadd.f32 %v314, %v542
        %v558 = vadd.f32 %v315, %v547
        %559 = vst [vmem:[#allocation2] sm:$0xff] %v552
        %560 = vst [vmem:[#allocation2 + $0x8] sm:$0xff] %v553
        %561 = vst [vmem:[#allocation2 + $0x10] sm:$0xff] %v554
        %562 = vst [vmem:[#allocation2 + $0x18] sm:$0xff] %v555
        %563 = vst [vmem:[#allocation2 + $0x20] sm:$0xff] %v556
        %564 = vst [vmem:[#allocation2 + $0x28] sm:$0xff] %v557
        %565 = vst [vmem:[#allocation2 + $0x30] sm:$0xff] %v558
        %p566 = scmp.eq.s32.totalorder %s30, 1
        // Predicated region
        $region49: #{tpu_custom_call.1} parent=31 // pred_check
          %p567 = pneg %p566
        $region50: #{tpu_custom_call.1} parent=31 // pred_check_branch
          %569 = sbr.rel (%p567) target = $region52
        $region51: #{tpu_custom_call.1} parent=31 // pred_region
          %v570 = vld [vmem:[#allocation2] sm:$0xff]
          %v571 = vld [vmem:[#allocation2 + $0x8] sm:$0xff]
          %v572 = vld [vmem:[#allocation2 + $0x10] sm:$0xff]
          %v573 = vld [vmem:[#allocation2 + $0x18] sm:$0xff]
          %v574 = vld [vmem:[#allocation2 + $0x20] sm:$0xff]
          %v575 = vld [vmem:[#allocation2 + $0x28] sm:$0xff]
          %v576 = vld [vmem:[#allocation2 + $0x30] sm:$0xff]
          %v577 = vld [vmem:[%s260] sm:$0x1]
          %v578 = vlaneseq
          %v579 = vshrl.u32 %v578, 7
          %v580 = vsub.s32 0, %v579
          %v581 = vrot.slane %v577, %v580
          %v582 = vmul.f32 %v570, %v581
          %v583 = vmul.f32 %v571, %v581
          %v584 = vmul.f32 %v572, %v581
          %v585 = vmul.f32 %v573, %v581
          %v586 = vmul.f32 %v574, %v581
          %v587 = vmul.f32 %v575, %v581
          %v588 = vmul.f32 %v576, %v581
          %v589 = vld [vmem:[%s260 + $0x1] sm:$0x1]
          %v590 = vlaneseq
          %v591 = vshrl.u32 %v590, 7
          %v592 = vsub.s32 0, %v591
          %v593 = vrot.slane %v589, %v592
          %v594 = vadd.f32 %v582, %v593
          %v595 = vadd.f32 %v583, %v593
          %v596 = vadd.f32 %v584, %v593
          %v597 = vadd.f32 %v585, %v593
          %v598 = vadd.f32 %v586, %v593
          %v599 = vadd.f32 %v587, %v593
          %v600 = vadd.f32 %v588, %v593
          %v601 = vmax.f32 %v594, 0.0
          %v602 = vmax.f32 %v595, 0.0
          %v603 = vmax.f32 %v596, 0.0
          %v604 = vmax.f32 %v597, 0.0
          %v605 = vmax.f32 %v598, 0.0
          %v606 = vmax.f32 %v599, 0.0
          %v607 = vmax.f32 %v600, 0.0
          %608 = vst [vmem:[%s292] sm:$0xff] %v601
          %609 = vst [vmem:[%s292 + $0x8] sm:$0xff] %v602
          %610 = vst [vmem:[%s292 + $0x10] sm:$0xff] %v603
          %611 = vst [vmem:[%s292 + $0x18] sm:$0xff] %v604
          %612 = vst [vmem:[%s292 + $0x20] sm:$0xff] %v605
          %613 = vst [vmem:[%s292 + $0x28] sm:$0xff] %v606
          %614 = vst [vmem:[%s292 + $0x30] sm:$0xff] %v607
        $region52: #{tpu_custom_call.1} parent=31 // pred_fallthru
          _
        %s615 = sand.u32 %s134, 1
        %s616 = scalar_lea.sflag [#allocation5], %s615
        %s617 = sand.u32 %s134, 1
        %s618 = smul.addr %s617, 56
        %s619 = scalar_lea.vmem [#allocation9], %s618
        // Predicated region
        $region53: #{tpu_custom_call.1} parent=31 // pred_check
          %p620 = pneg %p144
        $region54: #{tpu_custom_call.1} parent=31 // pred_check_branch
          %622 = sbr.rel (%p620) target = $region56
        $region55: #{tpu_custom_call.1} parent=31 // pred_region
          %s623 = smul.u32 7, %s28
          %s625 = ssub.s32 896, 896
          %626 = vsyncadd %s616, %s625
          %s627 = smul.addr %s623, 3
          %s628 = sadd.s32 %s29, %s627
          %s629 = smul.addr %s628, 128
          %s630 = scalar_lea.hbm %s3, %s629
          %s631 = sshll.u32 %s619, 4
          %s632 = int_to_ptr.vmem [resolvable:$true] %s631
          %637 = dma.vmem_to_hbm [thread:$0]  %s632, 896, %s630, %s616, 128, 384, 8
        $region56: #{tpu_custom_call.1} parent=31 // pred_fallthru
          _
      $region32: #{tpu_custom_call.1} parent=5 // pred_fallthru
        _
      %p638 = scmp.le.s32.totalorder 2, %s18
      // Predicated region
      $region57: #{tpu_custom_call.1} parent=5 // pred_check
        %p639 = pneg %p638
      $region58: #{tpu_custom_call.1} parent=5 // pred_check_branch
        %641 = sbr.rel (%p639) target = $region60
      $region59: #{tpu_custom_call.1} parent=5 // pred_region
        %s642 = ssub.s32 %s18, 2
        // Predicated region
        $region61: #{tpu_custom_call.1} parent=59 // pred_check
          %p643 = pneg %p150
        $region62: #{tpu_custom_call.1} parent=59 // pred_check_branch
          %645 = sbr.rel (%p643) target = $region64
        $region63: #{tpu_custom_call.1} parent=59 // pred_region
          %s646 = sand.u32 %s135, 1
          %s647 = scalar_lea.sflag [#allocation5], %s646
          %s648 = sand.u32 %s135, 1
          %s649 = smul.addr %s648, 56
          %s650 = scalar_lea.vmem [#allocation9], %s649
          %651 = dma.done %s647, 896
        $region64: #{tpu_custom_call.1} parent=59 // pred_fallthru
          _
      $region60: #{tpu_custom_call.1} parent=5 // pred_fallthru
        _
    $region6: #{tpu_custom_call.1} parent=1 // loop_footer
      %s22 = sadd.s32 1, %s18
    $region7: #{tpu_custom_call.1} parent=1 // loop_footer_branch
      %17 = sbr.rel target = $region3
    $region8: #{tpu_custom_call.1} parent=1 // loop_exit
      _
    %652 = vsyncpa [#allocation4], 1
    %s653 = scalar_lea.sflag [#allocation4], 1
    %654 = vsyncpa %s653, 1
    %655 = vsyncpa [#allocation7], 1
    %s656 = scalar_lea.sflag [#allocation7], 1
    %657 = vsyncpa %s656, 1
    %658 = vsyncpa [#allocation5], 1
    %s659 = scalar_lea.sflag [#allocation5], 1
    %660 = vsyncpa %s659, 1

</llo_original>
